<compile_context>
chip_gen: v7x
topology: tpu7x:2x2x1
jax: 0.10.0
libtpu: 0.0.40
codegen_flags: <defaults>
</compile_context>

<pallas_src>
import functools
import math

import jax
import jax.numpy as jnp
from jax.experimental import pallas as pl
from jax.experimental.pallas import tpu as pltpu

MASK_VALUE = -1e30  # large finite negative: avoids NaN if a row is fully masked


# ------------------------- tiled matmul (MXU) ------------------------------

def _matmul_kernel(x_ref, w_ref, o_ref, acc_ref):
    @pl.when(pl.program_id(2) == 0)
    def _init():
        acc_ref[...] = jnp.zeros_like(acc_ref)

    acc_ref[...] += jnp.dot(x_ref[...], w_ref[...],
                            preferred_element_type=jnp.float32)

    @pl.when(pl.program_id(2) == pl.num_programs(2) - 1)
    def _done():
        o_ref[...] = acc_ref[...].astype(o_ref.dtype)


def _pick_tile(dim, preferred):
    if dim <= preferred:
        return dim
    for t in (preferred, 512, 256, 128):
        if t <= preferred and dim % t == 0:
            return t
    return dim  # block == full array dim is always legal


def pallas_matmul(x, w, *, tm=256, tn=256, tk=512):
    """(M, K) @ (K, N) -> (M, N), tiled over an (M, N, K) grid with a f32 VMEM
    accumulator and double-buffered HBM->VMEM DMAs.  Small dims collapse to a
    single full-array block (the toy shapes here give grid (1,1,1))."""
    M, K = x.shape
    K2, N = w.shape
    assert K == K2
    bm, bn, bk = _pick_tile(M, tm), _pick_tile(N, tn), _pick_tile(K, tk)
    grid = (M // bm, N // bn, K // bk)
    return pl.pallas_call(
        _matmul_kernel,
        out_shape=jax.ShapeDtypeStruct((M, N), x.dtype),
        grid_spec=pltpu.PrefetchScalarGridSpec(
            num_scalar_prefetch=0,
            grid=grid,
            in_specs=[
                pl.BlockSpec((bm, bk), lambda i, j, k: (i, k)),
                pl.BlockSpec((bk, bn), lambda i, j, k: (k, j)),
            ],
            out_specs=pl.BlockSpec((bm, bn), lambda i, j, k: (i, j)),
            scratch_shapes=[pltpu.VMEM((bm, bn), jnp.float32)],
        ),
        compiler_params=pltpu.CompilerParams(
            dimension_semantics=("parallel", "parallel", "arbitrary")),
    )(x, w)


# ------------------ in-place KV-cache scatter (aliased) ---------------------

def _kv_update_kernel(pos_ref, xk_ref, xv_ref, kc_in, vc_in, kc_ref, vc_ref):
    # positions are consumed by the output index_map; cache inputs are only
    # there to be aliased (never read here).
    del pos_ref, kc_in, vc_in
    kc_ref[...] = xk_ref[...]
    vc_ref[...] = xv_ref[...]


def kv_cache_update(k_cache, v_cache, xk, xv, input_pos):
    """Scatter xk/xv (B, S, Hkv, hd) into the (B, L, Hkv, hd) caches at the
    sequence positions `input_pos`.  The caches are aliased to the outputs
    (input_output_aliases) so only the written rows move — no O(cache) copy."""
    B, L, Hkv, hd = k_cache.shape
    S = xk.shape[1]
    new_spec = pl.BlockSpec((B, 1, Hkv, hd), lambda i, pos: (0, i, 0, 0))
    out_spec = pl.BlockSpec((B, 1, Hkv, hd), lambda i, pos: (0, pos[i], 0, 0))
    return pl.pallas_call(
        _kv_update_kernel,
        out_shape=(jax.ShapeDtypeStruct(k_cache.shape, k_cache.dtype),
                   jax.ShapeDtypeStruct(v_cache.shape, v_cache.dtype)),
        grid_spec=pltpu.PrefetchScalarGridSpec(
            num_scalar_prefetch=1,
            grid=(S,),
            in_specs=[
                new_spec,                                # xk
                new_spec,                                # xv
                pl.BlockSpec(memory_space=pl.ANY),       # k_cache (aliased)
                pl.BlockSpec(memory_space=pl.ANY),       # v_cache (aliased)
            ],
            out_specs=[out_spec, out_spec],
        ),
        compiler_params=pltpu.CompilerParams(
            dimension_semantics=("arbitrary",)),
        # operand indices include the scalar-prefetch arg:
        # 0=input_pos, 1=xk, 2=xv, 3=k_cache, 4=v_cache
        input_output_aliases={3: 0, 4: 1},
    )(input_pos, xk, xv, k_cache, v_cache)


# --------------------------- attention kernel -------------------------------

def _attention_kernel(q_ref, k_ref, v_ref, pos_ref, o_ref, *, n_rep, scale):
    # q_ref: (1, S, H, hd) f32; k_ref/v_ref: (1, L, Hkv, hd) bf16 (un-repeated)
    # pos_ref: (S*n_rep, 1) int32 — query positions repeated n_rep times,
    #          row-major to match the (S, n_rep) -> (S*n_rep) query packing
    # o_ref: (1, S, H*hd)
    S, H, hd = q_ref.shape[1], q_ref.shape[2], q_ref.shape[3]
    L, Hkv = k_ref.shape[1], k_ref.shape[2]
    R = S * n_rep

    q_all = q_ref[0].astype(jnp.float32) * scale      # (S, H, hd); scale folded in
    k_all = k_ref[0]                                  # (L, Hkv, hd) bf16
    v_all = v_ref[0]

    # causal / unwritten-slot mask built in-kernel, hoisted out of the group
    # loop, already at the packed (R, L) shape (no dense (S, L) mask input)
    key_pos = jax.lax.broadcasted_iota(jnp.int32, (R, L), 1)
    valid = key_pos <= pos_ref[...]                   # (R, L) via (R, 1) bcast

    outs = []
    for g in range(Hkv):                              # one MXU pass per KV head
        # pack the n_rep query heads that share KV head g into the row dim:
        # rows ordered (s, r) row-major, i.e. row = s * n_rep + r
        q_g = q_all[:, g * n_rep:(g + 1) * n_rep, :].reshape(R, hd)
        q_g = q_g.astype(k_all.dtype)                 # bf16 for the MXU
        k_g = k_all[:, g, :]                          # (L, hd)
        v_g = v_all[:, g, :]
        s = jnp.dot(q_g, k_g.T, preferred_element_type=jnp.float32)   # (R, L)
        s = jnp.where(valid, s, MASK_VALUE)
        m = jnp.max(s, axis=-1, keepdims=True)
        p = jnp.exp(s - m)
        denom = jnp.sum(p, axis=-1, keepdims=True)
        o = jnp.dot(p.astype(v_g.dtype), v_g, preferred_element_type=jnp.float32)
        o = o * pl.reciprocal(denom, approx=True)     # EUP recip, after PV matmul
        # (S*n_rep, hd) -> (S, n_rep*hd): pure C-order reshape, no transpose
        outs.append(o.reshape(S, n_rep * hd).astype(o_ref.dtype))
    # one lane-dense store: columns ordered (kv_head, rep, hd) == head order
    o_ref[0] = jnp.concatenate(outs, axis=-1)


def pallas_attention(q, k_cache, v_cache, input_pos, scale, *, n_rep):
    """q: (B, S, H, hd); k_cache/v_cache: (B, L, Hkv, hd) bf16 (no repeat_kv).
    Returns (B, S, H*hd) — lane-dense, directly feeds the output projection.

    TODO(synk): at production L, add a third "arbitrary" grid axis over L with
    flash-style online softmax instead of loading the full-length K/V block.
    """
    B, S, H, hd = q.shape
    L, Hkv = k_cache.shape[1], k_cache.shape[2]
    R = S * n_rep
    pos_rep = jnp.repeat(input_pos.astype(jnp.int32), n_rep).reshape(R, 1)
    kernel = functools.partial(_attention_kernel, n_rep=n_rep, scale=scale)
    return pl.pallas_call(
        kernel,
        out_shape=jax.ShapeDtypeStruct((B, S, H * hd), q.dtype),
        grid_spec=pltpu.PrefetchScalarGridSpec(
            num_scalar_prefetch=0,
            grid=(B,),                                 # coarse grid: per batch
            in_specs=[
                pl.BlockSpec((1, S, H, hd), lambda b: (b, 0, 0, 0)),
                pl.BlockSpec((1, L, Hkv, hd), lambda b: (b, 0, 0, 0)),
                pl.BlockSpec((1, L, Hkv, hd), lambda b: (b, 0, 0, 0)),
                pl.BlockSpec((R, 1), lambda b: (0, 0)),
            ],
            out_specs=pl.BlockSpec((1, S, H * hd), lambda b: (b, 0, 0)),
        ),
        compiler_params=pltpu.CompilerParams(
            dimension_semantics=("parallel",)),
    )(q, k_cache, v_cache, pos_rep)


# ------------------------------- glue (JAX) ---------------------------------

def apply_rotary_embeddings(x, input_pos, cos_table, sin_table):
    """x: (B, S, H, hd). Matches torch view_as_complex/view_as_real semantics."""
    B, S, H, hd = x.shape
    cos = cos_table[input_pos]  # (S, hd//2)
    sin = sin_table[input_pos]
    xr = x.astype(jnp.float32).reshape(B, S, H, hd // 2, 2)
    x_re, x_im = xr[..., 0], xr[..., 1]
    c = cos[None, :, None, :]
    s = sin[None, :, None, :]
    o_re = x_re * c - x_im * s
    o_im = x_re * s + x_im * c
    out = jnp.stack([o_re, o_im], axis=-1).reshape(B, S, H, hd)
    return out.astype(x.dtype)


def self_attention_forward(x, input_pos, params, cos_table, sin_table,
                           k_cache, v_cache, *, n_heads, n_kv_heads):
    B, S, D = x.shape
    head_dim = D // n_heads
    n_rep = n_heads // n_kv_heads
    scale = 1.0 / math.sqrt(head_dim)
    nq = n_heads * head_dim
    nkv = n_kv_heads * head_dim

    # fused QKV projection: one MXU pass, wide (lane-dense) output
    w_qkv = jnp.concatenate([params["wq"], params["wk"], params["wv"]], axis=1)
    qkv = pallas_matmul(x.reshape(B * S, D), w_qkv)
    xq = qkv[:, :nq].reshape(B, S, n_heads, head_dim)
    xk = qkv[:, nq:nq + nkv].reshape(B, S, n_kv_heads, head_dim)
    xv = qkv[:, nq + nkv:].reshape(B, S, n_kv_heads, head_dim)

    # TODO(synk): RoPE left in XLA; could be fused into the QKV kernel.
    xq = apply_rotary_embeddings(xq, input_pos, cos_table, sin_table)
    xk = apply_rotary_embeddings(xk, input_pos, cos_table, sin_table)

    # bf16 cache (matches torch module) updated in place via aliasing
    keys_cache, values_cache = kv_cache_update(
        k_cache, v_cache,
        xk.astype(k_cache.dtype), xv.astype(v_cache.dtype), input_pos)

    # attention over the un-repeated GQA cache; mask generated in-kernel
    attn = pallas_attention(xq, keys_cache, values_cache, input_pos, scale,
                            n_rep=n_rep)                          # (B, S, H*hd)

    out = pallas_matmul(attn.reshape(B * S, n_heads * head_dim), params["wo"])
    return out.reshape(B, S, D), keys_cache, values_cache


# ------------------------------ reference (JAX) ------------------------------

def repeat_kv(x, n_rep):
    if n_rep == 1:
        return x
    b, s, nkv, hd = x.shape
    return jnp.broadcast_to(
        x[:, :, :, None, :], (b, s, nkv, n_rep, hd)).reshape(b, s, nkv * n_rep, hd)


def reference_forward(x, input_pos, params, cos_table, sin_table,
                      k_cache, v_cache, *, n_heads, n_kv_heads):
    B, S, D = x.shape
    head_dim = D // n_heads
    n_rep = n_heads // n_kv_heads
    L = k_cache.shape[1]
    x2d = x.reshape(B * S, D)
    xq = (x2d @ params["wq"]).reshape(B, S, n_heads, head_dim)
    xk = (x2d @ params["wk"]).reshape(B, S, n_kv_heads, head_dim)
    xv = (x2d @ params["wv"]).reshape(B, S, n_kv_heads, head_dim)
    xq = apply_rotary_embeddings(xq, input_pos, cos_table, sin_table)
    xk = apply_rotary_embeddings(xk, input_pos, cos_table, sin_table)
    k_new = k_cache.at[:, input_pos].set(xk.astype(k_cache.dtype))
    v_new = v_cache.at[:, input_pos].set(xv.astype(v_cache.dtype))
    keys = repeat_kv(k_new.astype(jnp.float32), n_rep)
    values = repeat_kv(v_new.astype(jnp.float32), n_rep)
    q_t = jnp.transpose(xq, (0, 2, 1, 3))
    k_t = jnp.transpose(keys, (0, 2, 1, 3))
    v_t = jnp.transpose(values, (0, 2, 1, 3))
    key_pos = jnp.arange(L)
    mask = jnp.where(key_pos[None, :] <= input_pos[:, None], 0.0, -jnp.inf)
    s = jnp.einsum("bhqd,bhkd->bhqk", q_t, k_t) / math.sqrt(head_dim)
    s = s + mask[None, None].astype(jnp.float32)
    p = jax.nn.softmax(s, axis=-1)
    o = jnp.einsum("bhqk,bhkd->bhqd", p, v_t)
    o = jnp.transpose(o, (0, 2, 1, 3)).reshape(B * S, n_heads * head_dim)
    return (o @ params["wo"]).reshape(B, S, D), k_new, v_new


# ----------------------------------- main ------------------------------------

if __name__ == "__main__":
    dim = 32
    n_heads = 4
    n_kv_heads = 2
    head_dim = dim // n_heads
    B = 2                 # == max_batch_size
    S = 8                 # prompt length (prefill)
    max_seq = 16          # max_context_size
    rope_theta = 10000.0

    key = jax.random.PRNGKey(0)
    kx, kq, kk, kv_, ko = jax.random.split(key, 5)

    x = jax.random.normal(kx, (B, S, dim), dtype=jnp.float32)
    input_pos = jnp.arange(S, dtype=jnp.int32)

    params = {
        "wq": 0.02 * jax.random.normal(kq, (dim, n_heads * head_dim), jnp.float32),
        "wk": 0.02 * jax.random.normal(kk, (dim, n_kv_heads * head_dim), jnp.float32),
        "wv": 0.02 * jax.random.normal(kv_, (dim, n_kv_heads * head_dim), jnp.float32),
        "wo": 0.02 * jax.random.normal(ko, (n_heads * head_dim, dim), jnp.float32),
    }

    # rotary frequency tables (cos/sin of pos * inv_freq)
    inv_freq = 1.0 / (rope_theta ** (jnp.arange(0, head_dim, 2, dtype=jnp.float32) / head_dim))
    angles = jnp.outer(jnp.arange(max_seq, dtype=jnp.float32), inv_freq)  # (max_seq, hd//2)
    cos_table = jnp.cos(angles)
    sin_table = jnp.sin(angles)

    # bf16 KV cache (matches the torch module's bf16 cache buffers)
    k_cache = jnp.zeros((B, max_seq, n_kv_heads, head_dim), dtype=jnp.bfloat16)
    v_cache = jnp.zeros((B, max_seq, n_kv_heads, head_dim), dtype=jnp.bfloat16)

    out, k_new, v_new = self_attention_forward(
        x, input_pos, params, cos_table, sin_table, k_cache, v_cache,
        n_heads=n_heads, n_kv_heads=n_kv_heads)
    out = jax.block_until_ready(out)

    ref_out, ref_k, ref_v = reference_forward(
        x, input_pos, params, cos_table, sin_table, k_cache, v_cache,
        n_heads=n_heads, n_kv_heads=n_kv_heads)

    assert out.shape == (B, S, dim)
    assert jnp.allclose(out, ref_out, atol=1e-2, rtol=1e-2), "output mismatch vs reference"
    assert jnp.allclose(k_new.astype(jnp.float32), ref_k.astype(jnp.float32),
                        atol=1e-6), "k cache mismatch vs reference"
    assert jnp.allclose(v_new.astype(jnp.float32), ref_v.astype(jnp.float32),
                        atol=1e-6), "v cache mismatch vs reference"

    print("KERNEL_OK")
</pallas_src>

<mosaic_0001>
module attributes {stable_mosaic.version = 11 : i64} {
  func.func @_matmul_kernel(%arg0: i32, %arg1: i32, %arg2: i32, %arg3: memref<16x32xf32, #tpu.memory_space<vmem>>, %arg4: memref<32x64xf32, #tpu.memory_space<vmem>>, %arg5: memref<16x64xf32, #tpu.memory_space<vmem>>, %arg6: memref<16x64xf32, #tpu.memory_space<vmem>>) attributes {dimension_semantics = [#tpu.dimension_semantics<parallel>, #tpu.dimension_semantics<parallel>, #tpu.dimension_semantics<arbitrary>], iteration_bounds = array<i64: 1, 1, 1>, scalar_prefetch = 0 : i64, scratch_operands = 1 : i64, tpu.core_type = #tpu.core_type<tc>, window_params = [{transform_indices = @transform_0, window_bounds = array<i64: 16, 32>}, {transform_indices = @transform_1, window_bounds = array<i64: 32, 64>}, {transform_indices = @transform_2, window_bounds = array<i64: 16, 64>}]} {
    %c0_i32 = arith.constant 0 : i32
    %0 = arith.cmpi eq, %arg2, %c0_i32 : i32
    %1 = arith.extui %0 : i1 to i32
    %c0_i32_0 = arith.constant 0 : i32
    %2 = arith.cmpi ne, %1, %c0_i32_0 : i32
    scf.if %2 {
      %cst_10 = arith.constant 0.000000e+00 : f32
      %12 = vector.broadcast %cst_10 : f32 to vector<16x64xf32>
      %c0_11 = arith.constant 0 : index
      %c0_12 = arith.constant 0 : index
      %13 = vector.load %arg6[%c0_11, %c0_12] : memref<16x64xf32, #tpu.memory_space<vmem>>, vector<16x64xf32>
      tpu.vector_store %arg6[%c0_11, %c0_12], %12 {strides = array<i32>} : memref<16x64xf32, #tpu.memory_space<vmem>>, vector<16x64xf32>,
    } else {
    }
    %c0 = arith.constant 0 : index
    %c0_1 = arith.constant 0 : index
    %3 = vector.load %arg6[%c0, %c0_1] : memref<16x64xf32, #tpu.memory_space<vmem>>, vector<16x64xf32>
    %c0_2 = arith.constant 0 : index
    %c0_3 = arith.constant 0 : index
    %4 = vector.load %arg3[%c0_2, %c0_3] : memref<16x32xf32, #tpu.memory_space<vmem>>, vector<16x32xf32>
    %c0_4 = arith.constant 0 : index
    %c0_5 = arith.constant 0 : index
    %5 = vector.load %arg4[%c0_4, %c0_5] : memref<32x64xf32, #tpu.memory_space<vmem>>, vector<32x64xf32>
    %cst = arith.constant dense<0.000000e+00> : vector<16x64xf32>
    %6 = tpu.matmul %4, %5, %cst {dimension_numbers = #tpu.dot_dimension_numbers<[1], [0], [0], [1], [0, 0, 1, 1], [], []>} : vector<16x32xf32>, vector<32x64xf32>, vector<16x64xf32> -> vector<16x64xf32>
    %7 = arith.addf %3, %6 : vector<16x64xf32>
    %c0_6 = arith.constant 0 : index
    %c0_7 = arith.constant 0 : index
    %8 = vector.load %arg6[%c0_6, %c0_7] : memref<16x64xf32, #tpu.memory_space<vmem>>, vector<16x64xf32>
    tpu.vector_store %arg6[%c0_6, %c0_7], %7 {strides = array<i32>} : memref<16x64xf32, #tpu.memory_space<vmem>>, vector<16x64xf32>,
    %c0_i32_8 = arith.constant 0 : i32
    %9 = arith.cmpi eq, %arg2, %c0_i32_8 : i32
    %10 = arith.extui %9 : i1 to i32
    %c0_i32_9 = arith.constant 0 : i32
    %11 = arith.cmpi ne, %10, %c0_i32_9 : i32
    scf.if %11 {
      %c0_10 = arith.constant 0 : index
      %c0_11 = arith.constant 0 : index
      %12 = vector.load %arg6[%c0_10, %c0_11] : memref<16x64xf32, #tpu.memory_space<vmem>>, vector<16x64xf32>
      %c0_12 = arith.constant 0 : index
      %c0_13 = arith.constant 0 : index
      %13 = vector.load %arg5[%c0_12, %c0_13] : memref<16x64xf32, #tpu.memory_space<vmem>>, vector<16x64xf32>
      tpu.vector_store %arg5[%c0_12, %c0_13], %12 {strides = array<i32>} : memref<16x64xf32, #tpu.memory_space<vmem>>, vector<16x64xf32>,
    } else {
    }
    return
  }
  func.func @transform_0(%arg0: i32, %arg1: i32, %arg2: i32) -> (i32, i32) {
    %c0_i32 = arith.constant 0 : i32
    return %arg0, %arg2 : i32, i32
  }
  func.func @transform_1(%arg0: i32, %arg1: i32, %arg2: i32) -> (i32, i32) {
    %c0_i32 = arith.constant 0 : i32
    return %arg2, %arg1 : i32, i32
  }
  func.func @transform_2(%arg0: i32, %arg1: i32, %arg2: i32) -> (i32, i32) {
    %c0_i32 = arith.constant 0 : i32
    return %arg0, %arg1 : i32, i32
  }
}

</mosaic_0001>

<llo_original>
// kernel: tpu_custom_call.1
$region0: #{tpu_custom_call.1}
  #allocation0 [shape = 'u32[]', space=smem, size = 0x4, offset = 0x4, fixed_abs, tag = 'smem constant byte address 0x4 - core index']
  #allocation1 [shape = 'u32[144,128]{1,0:T(1,128)}', space=vmem, size = 0x12000, scoped, tag = 'internal scratch']
  #allocation2 [shape = 'f32[16,64]{1,0:T(8,128)}', space=vmem, size = 0x2000, scoped, tag = 'scratch operand']
  %s0 = inlined_call_operand.hbm [shape: f32[16,32], index: 0, kind: input, shape index: {}]
  %s1 = inlined_call_operand.hbm [shape: f32[32,64], index: 1, kind: input, shape index: {}]
  %s2 = inlined_call_operand.hbm [shape: f32[16,64], index: 2, kind: output, shape index: {}]
  %s3 = sld [smem:[#allocation0]]
  $region34: #{tpu_custom_call.1} parent=0
    _
  %s5 = ssub.s32 1, %s3
  %s6 = scalar_select 0, %s5, %s3
  $region1: #{tpu_custom_call.1} parent=0
    #allocation3 [shape = 'u8[8192]{0}', space=vmem, size = 0x2000, scoped, tag = 'input window, operand 0, single buffered']
    #allocation4 [shape = 's32[1]{0}', space=sflag, size = 0x4, scoped, tag = 'scoped memory for tpu_custom_call.1']
    #allocation5 [shape = 's32[1]{0}', space=sflag, size = 0x4, scoped, tag = 'scoped memory for tpu_custom_call.1']
    #allocation6 [shape = 'u8[16384]{0}', space=vmem, size = 0x4000, scoped, tag = 'input window, operand 1, single buffered']
    #allocation7 [shape = 's32[1]{0}', space=sflag, size = 0x4, scoped, tag = 'scoped memory for tpu_custom_call.1']
    #allocation8 [shape = 'u8[8192]{0}', space=vmem, size = 0x2000, scoped, tag = 'output window, operand 0, single buffered']
    %7 = vsyncpa [#allocation4], 0
    %8 = vsyncpa [#allocation7], 0
    %9 = vsyncpa [#allocation5], 0
    // Predicated region
    $region2: #{tpu_custom_call.1} parent=1 // pred_check
      _
    $region3: #{tpu_custom_call.1} parent=1 // pred_check_branch
      %11 = sbr.rel (0) target = $region5
    $region4: #{tpu_custom_call.1} parent=1 // pred_region
      %s13 = ssub.s32 256, 256
      %14 = vsyncadd [#allocation4], %s13
      %s15 = sshll.u32 [#allocation3], 4
      %s16 = int_to_ptr.vmem [resolvable:$true] %s15
      %21 = dma.hbm_to_vmem [thread:$0]  %s0, 256, %s16, [#allocation4], 128, 128, 8
    $region5: #{tpu_custom_call.1} parent=1 // pred_fallthru
      _
    // Predicated region
    $region6: #{tpu_custom_call.1} parent=1 // pred_check
      _
    $region7: #{tpu_custom_call.1} parent=1 // pred_check_branch
      %23 = sbr.rel (0) target = $region9
    $region8: #{tpu_custom_call.1} parent=1 // pred_region
      %s25 = ssub.s32 512, 512
      %26 = vsyncadd [#allocation7], %s25
      %s27 = sshll.u32 [#allocation6], 4
      %s28 = int_to_ptr.vmem [resolvable:$true] %s27
      %33 = dma.hbm_to_vmem [thread:$0]  %s1, 512, %s28, [#allocation7], 128, 128, 8
    $region9: #{tpu_custom_call.1} parent=1 // pred_fallthru
      _
    // Predicated region
    $region10: #{tpu_custom_call.1} parent=1 // pred_check
      _
    $region11: #{tpu_custom_call.1} parent=1 // pred_check_branch
      %35 = sbr.rel (0) target = $region13
    $region12: #{tpu_custom_call.1} parent=1 // pred_region
      %36 = dma.done [#allocation4], 256
    $region13: #{tpu_custom_call.1} parent=1 // pred_fallthru
      _
    // Predicated region
    $region14: #{tpu_custom_call.1} parent=1 // pred_check
      _
    $region15: #{tpu_custom_call.1} parent=1 // pred_check_branch
      %38 = sbr.rel (0) target = $region17
    $region16: #{tpu_custom_call.1} parent=1 // pred_region
      %39 = dma.done [#allocation7], 512
    $region17: #{tpu_custom_call.1} parent=1 // pred_fallthru
      _
    %p40 = scmp.eq.s32.totalorder 0, 0
    // Predicated region
    $region18: #{tpu_custom_call.1} parent=1 // pred_check
      %p41 = pneg %p40
    $region19: #{tpu_custom_call.1} parent=1 // pred_check_branch
      %43 = sbr.rel (%p41) target = $region21
    $region20: #{tpu_custom_call.1} parent=1 // pred_region
      %vm44 = vcmask 523264
      %45 = vst.msk [vmem:[#allocation2] sm:$0xff] %vm44, 0.0
      %46 = vst.msk [vmem:[#allocation2 + $0x8] sm:$0xff] %vm44, 0.0
    $region21: #{tpu_custom_call.1} parent=1 // pred_fallthru
      _
    %v47 = vld [vmem:[#allocation2] sm:$0xff]
    %v48 = vld [vmem:[#allocation2 + $0x8] sm:$0xff]
    %v49 = vld [vmem:[#allocation3] sm:$0xff]
    %v50 = vld [vmem:[#allocation3 + $0x8] sm:$0xff]
    %v51 = vld [vmem:[#allocation6] sm:$0xff]
    %v52 = vld [vmem:[#allocation6 + $0x8] sm:$0xff]
    %v53 = vld [vmem:[#allocation6 + $0x10] sm:$0xff]
    %v54 = vld [vmem:[#allocation6 + $0x18] sm:$0xff]
    %vm55 = vcmask 261120
    %v57 = vsel %vm55, %v49, 0
    %v60 = vsel %vm55, %v50, 0
    %62 = vmatprep.subr.mxu0 0.0
    %63 = vmatpush1.msra.mxu0 %v51
    %64 = vmatprep.subr.mxu0 0.0
    %65 = vmatpush1.msra.mxu0 %v52
    %66 = vmatprep.subr.mxu0 0.0
    %67 = vmatpush1.msra.mxu0 %v53
    %68 = vmatprep.subr.mxu0 0.0
    %69 = vmatpush1.msra.mxu0 %v54
    %70 = vmatprep.subr.mxu0 0.0
    %71 = vmatpush1.msra.mxu0 0.0
    %72 = vmatprep.subr.mxu0 0.0
    %73 = vmatpush1.msra.mxu0 0.0
    %74 = vmatprep.subr.mxu0 0.0
    %75 = vmatpush1.msra.mxu0 0.0
    %76 = vmatprep.subr.mxu0 0.0
    %77 = vmatpush1.msra.mxu0 0.0
    %78 = vmatprep.subr.mxu0 0.0
    %79 = vmatpush1.msra.mxu0 0.0
    %80 = vmatprep.subr.mxu0 0.0
    %81 = vmatpush1.msra.mxu0 0.0
    %82 = vmatprep.subr.mxu0 0.0
    %83 = vmatpush1.msra.mxu0 0.0
    %84 = vmatprep.subr.mxu0 0.0
    %85 = vmatpush1.msra.mxu0 0.0
    %86 = vmatprep.subr.mxu0 0.0
    %87 = vmatpush1.msra.mxu0 0.0
    %88 = vmatprep.subr.mxu0 0.0
    %89 = vmatpush1.msra.mxu0 0.0
    %90 = vmatprep.subr.mxu0 0.0
    %91 = vmatpush1.msra.mxu0 0.0
    %92 = vmatprep.subr.mxu0 0.0
    %93 = vmatpush1.msra.mxu0 0.0
    %94 = vmatprep.subr.mxu0 0.0
    %95 = vmatpush1.msra.mxu0 0.0
    %96 = vmatprep.subr.mxu0 0.0
    %97 = vmatpush1.msra.mxu0 0.0
    %98 = vmatprep.subr.mxu0 0.0
    %99 = vmatpush1.msra.mxu0 0.0
    %100 = vmatprep.subr.mxu0 0.0
    %101 = vmatpush1.msra.mxu0 0.0
    %102 = vmatprep.subr.mxu0 0.0
    %103 = vmatpush1.msra.mxu0 0.0
    %104 = vmatprep.subr.mxu0 0.0
    %105 = vmatpush1.msra.mxu0 0.0
    %106 = vmatprep.subr.mxu0 0.0
    %107 = vmatpush1.msra.mxu0 0.0
    %108 = vmatprep.subr.mxu0 0.0
    %109 = vmatpush1.msra.mxu0 0.0
    %110 = vmatprep.subr.mxu0 0.0
    %111 = vmatpush1.msra.mxu0 0.0
    %112 = vmatprep.subr.mxu0 0.0
    %113 = vmatpush1.msra.mxu0 0.0
    %114 = vmatprep.subr.mxu0 0.0
    %115 = vmatpush1.msra.mxu0 0.0
    %116 = vmatprep.subr.mxu0 0.0
    %117 = vmatpush1.msra.mxu0 0.0
    %118 = vmatprep.subr.mxu0 0.0
    %119 = vmatpush1.msra.mxu0 0.0
    %120 = vmatprep.subr.mxu0 0.0
    %121 = vmatpush1.msra.mxu0 0.0
    %122 = vmatprep.subr.mxu0 0.0
    %123 = vmatpush1.msra.mxu0 0.0
    %124 = vmatprep.subr.mxu0 0.0
    %125 = vmatpush1.msra.mxu0 0.0
    %126 = vmatprep.mubr.f32.mxu0 0.0
    %127 = vmatmul.mubr.f32.gmra.mrb[0].mxu0 %v57
    %v128 = vpop.f32.mrb[0].mxu0
    %v129 = vadd.f32 0.0, %v128
    %v130 = vpop.f32.mrb[0].mxu0
    %131 = vmatprep.mubr.f32.mxu0 0.0
    %132 = vmatmul.mubr.f32.gmra.mrb[0].mxu0 %v60
    %v133 = vpop.f32.mrb[0].mxu0
    %v134 = vadd.f32 0.0, %v133
    %v135 = vpop.f32.mrb[0].mxu0
    %136 = vdwg.mxu0
    %v137 = vadd.f32 %v47, %v129
    %v138 = vadd.f32 %v48, %v134
    %vm139 = vcmask 523264
    %140 = vst.msk [vmem:[#allocation2] sm:$0xff] %vm139, %v137
    %141 = vst.msk [vmem:[#allocation2 + $0x8] sm:$0xff] %vm139, %v138
    // Predicated region
    $region22: #{tpu_custom_call.1} parent=1 // pred_check
      %p142 = pneg %p40
    $region23: #{tpu_custom_call.1} parent=1 // pred_check_branch
      %144 = sbr.rel (%p142) target = $region25
    $region24: #{tpu_custom_call.1} parent=1 // pred_region
      %v145 = vld [vmem:[#allocation2] sm:$0xff]
      %v146 = vld [vmem:[#allocation2 + $0x8] sm:$0xff]
      %147 = vst.msk [vmem:[#allocation8] sm:$0xff] %vm139, %v145
      %148 = vst.msk [vmem:[#allocation8 + $0x8] sm:$0xff] %vm139, %v146
    $region25: #{tpu_custom_call.1} parent=1 // pred_fallthru
      _
    // Predicated region
    $region26: #{tpu_custom_call.1} parent=1 // pred_check
      _
    $region27: #{tpu_custom_call.1} parent=1 // pred_check_branch
      %150 = sbr.rel (0) target = $region29
    $region28: #{tpu_custom_call.1} parent=1 // pred_region
      %s152 = ssub.s32 256, 256
      %153 = vsyncadd [#allocation5], %s152
      %s154 = sshll.u32 [#allocation8], 4
      %s155 = int_to_ptr.vmem [resolvable:$true] %s154
      %160 = dma.vmem_to_hbm [thread:$0]  %s155, 256, %s2, [#allocation5], 128, 128, 8
    $region29: #{tpu_custom_call.1} parent=1 // pred_fallthru
      _
    // Predicated region
    $region30: #{tpu_custom_call.1} parent=1 // pred_check
      _
    $region31: #{tpu_custom_call.1} parent=1 // pred_check_branch
      %162 = sbr.rel (0) target = $region33
    $region32: #{tpu_custom_call.1} parent=1 // pred_region
      %163 = dma.done [#allocation5], 256
    $region33: #{tpu_custom_call.1} parent=1 // pred_fallthru
      _
    %164 = vsyncpa [#allocation4], 1
    %165 = vsyncpa [#allocation7], 1
    %166 = vsyncpa [#allocation5], 1

</llo_original>
